<compile_context>
chip_gen: v7x
topology: tpu7x:2x2x1
jax: 0.10.0
libtpu: 0.0.40
codegen_flags: <defaults>
</compile_context>

<pallas_src>
from functools import partial

import jax
import jax.numpy as jnp
from jax.experimental import pallas as pl
from jax.experimental.pallas import tpu as pltpu

NEG_SLOPE = 0.01   # torch.nn.LeakyReLU default
LN_EPS = 1e-5      # torch.nn.LayerNorm default


def _leaky_relu(x):
    return jnp.where(x > 0, x, NEG_SLOPE * x)


def _var_norm(x, axis):
    """LayerNorm (no affine) specialised for zero-mean inputs: variance-only."""
    var = jnp.mean(x * x, axis=axis, keepdims=True)
    return x * jax.lax.rsqrt(var + LN_EPS)


def _layernorm_noaffine(x, axis):
    mu = jnp.mean(x, axis=axis, keepdims=True)
    var = jnp.mean((x - mu) ** 2, axis=axis, keepdims=True)
    return (x - mu) * jax.lax.rsqrt(var + LN_EPS)


def lse_kernel(xT_ref, w1_ref, b1_ref, w2_ref, b2_ref, w3t_ref, b3_ref, o_ref):
    # Layer 1: h1^T = LeakyReLU(LN(W1' @ x^T + b1')), shape (n_hidden, tile_m).
    # Weights are pre-centered -> per-sample mean is already zero, so the LN is
    # a single variance-only pass.
    h = jnp.dot(w1_ref[...], xT_ref[...], preferred_element_type=jnp.float32)
    h = h + b1_ref[...]                      # (n_hidden, 1) broadcast over lanes
    h = _leaky_relu(_var_norm(h, axis=0))

    # Layer 2: same structure; cast back to the weight dtype for the MXU
    # (no-op in the f32 path).
    h2 = jnp.dot(w2_ref[...], h.astype(w2_ref.dtype),
                 preferred_element_type=jnp.float32)
    h2 = h2 + b2_ref[...]
    h2 = _leaky_relu(_var_norm(h2, axis=0))

    # Output head Linear(n_hidden -> 1) on the (idle) MXU:
    # (1, n_hidden) @ (n_hidden, tile_m) -> lane-dense (1, tile_m) row.
    y = jnp.dot(w3t_ref[...], h2, preferred_element_type=jnp.float32)
    y = y + b3_ref[0]                        # SMEM scalar bias
    o_ref[...] = _leaky_relu(y).astype(o_ref.dtype)


@partial(jax.jit, static_argnames=("tile_m", "use_bf16"))
def _lse_core(x, params, *, tile_m, use_bf16):
    N, n_input = x.shape
    n_hidden = params["w1"].shape[0]

    # Pre-center weights/biases over the output-feature axis (exact rewrite of
    # the LayerNorm mean subtraction).  Tiny arrays — negligible cost per call.
    w1 = params["w1"] - jnp.mean(params["w1"], axis=0, keepdims=True)
    b1 = params["b1"] - jnp.mean(params["b1"])
    w2 = params["w2"] - jnp.mean(params["w2"], axis=0, keepdims=True)
    b2 = params["b2"] - jnp.mean(params["b2"])
    w3t = params["w3"].T                                   # (1, n_hidden)
    b3 = params["b3"]

    # Transpose (+ optional bf16 cast) fuses into a single copy under jit.
    xT = x.T                                               # (n_input, N)
    if use_bf16:
        xT = xT.astype(jnp.bfloat16)
        w1 = w1.astype(jnp.bfloat16)
        w2 = w2.astype(jnp.bfloat16)
    x_itemsize = 2 if use_bf16 else 4

    num_tiles = pl.cdiv(N, tile_m)
    const = lambda shape: pl.BlockSpec(shape, lambda i: (0, 0))

    weight_bytes = (n_hidden * n_input + n_hidden * n_hidden + 3 * n_hidden + 1) * 4
    cost = pl.CostEstimate(
        flops=2 * N * (n_input * n_hidden + n_hidden * n_hidden + n_hidden),
        transcendentals=2 * N,                             # two rsqrt per sample
        bytes_accessed=N * n_input * x_itemsize + N * 4 + weight_bytes,
    )

    out = pl.pallas_call(
        lse_kernel,
        out_shape=jax.ShapeDtypeStruct((1, N), jnp.float32),
        grid_spec=pltpu.PrefetchScalarGridSpec(
            num_scalar_prefetch=0,
            grid=(num_tiles,),
            in_specs=[
                pl.BlockSpec((n_input, tile_m), lambda i: (0, i)),   # x^T tile
                const((n_hidden, n_input)),                          # W1'
                const((n_hidden, 1)),                                # b1' (column)
                const((n_hidden, n_hidden)),                         # W2'
                const((n_hidden, 1)),                                # b2' (column)
                const((1, n_hidden)),                                # w3^T (row)
                pl.BlockSpec(memory_space=pltpu.MemorySpace.SMEM),   # b3 scalar
            ],
            out_specs=pl.BlockSpec((1, tile_m), lambda i: (0, i)),   # lane-dense
        ),
        compiler_params=pltpu.CompilerParams(
            dimension_semantics=("parallel",),
            vmem_limit_bytes=32 * 1024 * 1024),
        cost_estimate=cost,
    )(xT, w1, b1, w2, b2, w3t, b3)

    return out.reshape(N, 1)


def library_size_encoder(x, params, *, tile_m=2048, use_bf16=True):
    """x: (N, n_input) float32; params hold PyTorch-oriented weights (make_params)."""
    N, n_input = x.shape
    n_hidden = params["w1"].shape[0]
    x_itemsize = 2 if use_bf16 else 4

    # VMEM-aware tile cap (v7x has only 64 MiB / TC; v5e default scoped VMEM is
    # 16 MiB, which we raise to 32 MiB via vmem_limit_bytes above).
    try:
        vmem_cap = int(pltpu.get_tpu_info().vmem_capacity_bytes)
    except Exception:
        vmem_cap = 64 << 20
    budget = min(vmem_cap // 2, 24 << 20)
    bytes_per_col = (n_input * x_itemsize * 2       # double-buffered x^T tile
                     + 3 * n_hidden * 4             # f32 intermediates (worst case)
                     + 2 * 4)                       # double-buffered output row
    max_cols = max(128, (budget // bytes_per_col) // 128 * 128)

    tile_m = max(128, min(tile_m, max_cols, 128 * pl.cdiv(N, 128)))
    return _lse_core(x, params, tile_m=tile_m, use_bf16=use_bf16)


def make_params(key, n_input, n_hidden):
    """Deterministic synthetic parameters in PyTorch Linear orientation."""
    ks = jax.random.split(key, 6)
    s1 = 1.0 / jnp.sqrt(n_input)
    s2 = 1.0 / jnp.sqrt(n_hidden)
    return {
        "w1": jax.random.uniform(ks[0], (n_hidden, n_input), jnp.float32, -s1, s1),
        "b1": jax.random.uniform(ks[1], (n_hidden, 1), jnp.float32, -s1, s1),
        "w2": jax.random.uniform(ks[2], (n_hidden, n_hidden), jnp.float32, -s2, s2),
        "b2": jax.random.uniform(ks[3], (n_hidden, 1), jnp.float32, -s2, s2),
        "w3": jax.random.uniform(ks[4], (n_hidden, 1), jnp.float32, -s2, s2),
        "b3": jax.random.uniform(ks[5], (1,), jnp.float32, -s2, s2),
    }


def reference(x, p):
    """Plain-JAX reference with the original (uncentered) weights + full LayerNorm."""
    h = x @ p["w1"].T + p["b1"][:, 0]
    h = _leaky_relu(_layernorm_noaffine(h, axis=-1))
    h = h @ p["w2"].T + p["b2"][:, 0]
    h = _leaky_relu(_layernorm_noaffine(h, axis=-1))
    y = h @ p["w3"] + p["b3"]
    return _leaky_relu(y)


if __name__ == "__main__":
    key = jax.random.PRNGKey(0)
    kx, kp, kx2 = jax.random.split(key, 3)

    n_input, n_hidden = 32, 128
    params = make_params(kp, n_input, n_hidden)

    # Small batch (single partial tile, no padding materialised), f32 path.
    N = 16
    x = jax.random.normal(kx, (N, n_input), jnp.float32)
    out = jax.block_until_ready(library_size_encoder(x, params, use_bf16=False))
    ref = reference(x, params)
    assert out.shape == (N, 1)
    assert jnp.allclose(out, ref, atol=5e-4, rtol=5e-4)

    # Batch not divisible by the tile / 128: exercises the partial last block.
    N2 = 300
    x2 = jax.random.normal(kx2, (N2, n_input), jnp.float32)
    out2 = jax.block_until_ready(library_size_encoder(x2, params, use_bf16=False))
    ref2 = reference(x2, params)
    assert out2.shape == (N2, 1)
    assert jnp.allclose(out2, ref2, atol=5e-4, rtol=5e-4)

    # Default path: bf16 matmul inputs (f32 accumulation / LN / LeakyReLU),
    # tolerance-checked against the f32 reference.
    out_bf16 = jax.block_until_ready(library_size_encoder(x2, params))
    assert out_bf16.shape == (N2, 1)
    assert jnp.allclose(out_bf16, ref2, atol=5e-2, rtol=5e-2)

    print("KERNEL_OK")
</pallas_src>

<mosaic_0001>
module attributes {stable_mosaic.version = 11 : i64} {
  func.func @lse_kernel(%arg0: i32, %arg1: memref<32x128xf32, #tpu.memory_space<vmem>>, %arg2: memref<128x32xf32, #tpu.memory_space<vmem>>, %arg3: memref<128x1xf32, #tpu.memory_space<vmem>>, %arg4: memref<128x128xf32, #tpu.memory_space<vmem>>, %arg5: memref<128x1xf32, #tpu.memory_space<vmem>>, %arg6: memref<1x128xf32, #tpu.memory_space<vmem>>, %arg7: memref<1xf32, #tpu.memory_space<smem>>, %arg8: memref<1x128xf32, #tpu.memory_space<vmem>>) attributes {dimension_semantics = [#tpu.dimension_semantics<parallel>], iteration_bounds = array<i64: 1>, scalar_prefetch = 0 : i64, scratch_operands = 0 : i64, tpu.core_type = #tpu.core_type<tc>, window_params = [{transform_indices = @transform_0, window_bounds = array<i64: 32, 128>}, {pipeline_mode = #tpu.pipeline_mode<synchronous>, transform_indices = @transform_1, window_bounds = array<i64: 128, 32>}, {pipeline_mode = #tpu.pipeline_mode<synchronous>, transform_indices = @transform_2, window_bounds = array<i64: 128, 1>}, {pipeline_mode = #tpu.pipeline_mode<synchronous>, transform_indices = @transform_3, window_bounds = array<i64: 128, 128>}, {pipeline_mode = #tpu.pipeline_mode<synchronous>, transform_indices = @transform_4, window_bounds = array<i64: 128, 1>}, {pipeline_mode = #tpu.pipeline_mode<synchronous>, transform_indices = @transform_5, window_bounds = array<i64: 1, 128>}, {transform_indices = @transform_6, window_bounds = array<i64: 1>}, {transform_indices = @transform_7, window_bounds = array<i64: 1, 128>}]} {
    %c0 = arith.constant 0 : index
    %c0_0 = arith.constant 0 : index
    %0 = vector.load %arg2[%c0, %c0_0] : memref<128x32xf32, #tpu.memory_space<vmem>>, vector<128x32xf32>
    %c0_1 = arith.constant 0 : index
    %c0_2 = arith.constant 0 : index
    %1 = vector.load %arg1[%c0_1, %c0_2] : memref<32x128xf32, #tpu.memory_space<vmem>>, vector<32x128xf32>
    %cst = arith.constant dense<0.000000e+00> : vector<128x128xf32>
    %2 = tpu.matmul %0, %1, %cst {dimension_numbers = #tpu.dot_dimension_numbers<[1], [0], [0], [1], [0, 0, 1, 1], [], []>} : vector<128x32xf32>, vector<32x128xf32>, vector<128x128xf32> -> vector<128x128xf32>
    %c0_3 = arith.constant 0 : index
    %c0_4 = arith.constant 0 : index
    %3 = vector.load %arg3[%c0_3, %c0_4] : memref<128x1xf32, #tpu.memory_space<vmem>>, vector<128x1xf32>
    %4 = vector.broadcast %3 : vector<128x1xf32> to vector<128x128xf32>
    %5 = arith.addf %2, %4 : vector<128x128xf32>
    %6 = arith.mulf %5, %5 : vector<128x128xf32>
    %cst_5 = arith.constant dense<0.000000e+00> : vector<128xf32>
    %7 = vector.multi_reduction <add>, %6, %cst_5 [0] : vector<128x128xf32> to vector<128xf32>
    %8 = vector.shape_cast %7 : vector<128xf32> to vector<1x128xf32>
    %cst_6 = arith.constant 1.280000e+02 : f32
    %9 = vector.broadcast %cst_6 : f32 to vector<1x128xf32>
    %10 = arith.divf %8, %9 : vector<1x128xf32>
    %cst_7 = arith.constant 9.99999974E-6 : f32
    %11 = vector.broadcast %cst_7 : f32 to vector<1x128xf32>
    %12 = arith.addf %10, %11 : vector<1x128xf32>
    %13 = math.rsqrt %12 : vector<1x128xf32>
    %14 = vector.broadcast %13 : vector<1x128xf32> to vector<128x128xf32>
    %15 = arith.mulf %5, %14 : vector<128x128xf32>
    %cst_8 = arith.constant 0.000000e+00 : f32
    %16 = vector.broadcast %cst_8 : f32 to vector<128x128xf32>
    %17 = arith.cmpf ogt, %15, %16 : vector<128x128xf32>
    %cst_9 = arith.constant 0.00999999977 : f32
    %18 = vector.broadcast %cst_9 : f32 to vector<128x128xf32>
    %19 = arith.mulf %18, %15 : vector<128x128xf32>
    %20 = arith.select %17, %15, %19 : vector<128x128xi1>, vector<128x128xf32>
    %c0_10 = arith.constant 0 : index
    %c0_11 = arith.constant 0 : index
    %21 = vector.load %arg4[%c0_10, %c0_11] : memref<128x128xf32, #tpu.memory_space<vmem>>, vector<128x128xf32>
    %cst_12 = arith.constant dense<0.000000e+00> : vector<128x128xf32>
    %22 = tpu.matmul %21, %20, %cst_12 {dimension_numbers = #tpu.dot_dimension_numbers<[1], [0], [0], [1], [0, 0, 1, 1], [], []>} : vector<128x128xf32>, vector<128x128xf32>, vector<128x128xf32> -> vector<128x128xf32>
    %c0_13 = arith.constant 0 : index
    %c0_14 = arith.constant 0 : index
    %23 = vector.load %arg5[%c0_13, %c0_14] : memref<128x1xf32, #tpu.memory_space<vmem>>, vector<128x1xf32>
    %24 = vector.broadcast %23 : vector<128x1xf32> to vector<128x128xf32>
    %25 = arith.addf %22, %24 : vector<128x128xf32>
    %26 = arith.mulf %25, %25 : vector<128x128xf32>
    %cst_15 = arith.constant dense<0.000000e+00> : vector<128xf32>
    %27 = vector.multi_reduction <add>, %26, %cst_15 [0] : vector<128x128xf32> to vector<128xf32>
    %28 = vector.shape_cast %27 : vector<128xf32> to vector<1x128xf32>
    %cst_16 = arith.constant 1.280000e+02 : f32
    %29 = vector.broadcast %cst_16 : f32 to vector<1x128xf32>
    %30 = arith.divf %28, %29 : vector<1x128xf32>
    %cst_17 = arith.constant 9.99999974E-6 : f32
    %31 = vector.broadcast %cst_17 : f32 to vector<1x128xf32>
    %32 = arith.addf %30, %31 : vector<1x128xf32>
    %33 = math.rsqrt %32 : vector<1x128xf32>
    %34 = vector.broadcast %33 : vector<1x128xf32> to vector<128x128xf32>
    %35 = arith.mulf %25, %34 : vector<128x128xf32>
    %cst_18 = arith.constant 0.000000e+00 : f32
    %36 = vector.broadcast %cst_18 : f32 to vector<128x128xf32>
    %37 = arith.cmpf ogt, %35, %36 : vector<128x128xf32>
    %cst_19 = arith.constant 0.00999999977 : f32
    %38 = vector.broadcast %cst_19 : f32 to vector<128x128xf32>
    %39 = arith.mulf %38, %35 : vector<128x128xf32>
    %40 = arith.select %37, %35, %39 : vector<128x128xi1>, vector<128x128xf32>
    %c0_20 = arith.constant 0 : index
    %c0_21 = arith.constant 0 : index
    %41 = vector.load %arg6[%c0_20, %c0_21] : memref<1x128xf32, #tpu.memory_space<vmem>>, vector<1x128xf32>
    %cst_22 = arith.constant dense<0.000000e+00> : vector<1x128xf32>
    %42 = tpu.matmul %41, %40, %cst_22 {dimension_numbers = #tpu.dot_dimension_numbers<[1], [0], [0], [1], [0, 0, 1, 1], [], []>} : vector<1x128xf32>, vector<128x128xf32>, vector<1x128xf32> -> vector<1x128xf32>
    %c0_23 = arith.constant 0 : index
    %43 = memref.load %arg7[%c0_23] : memref<1xf32, #tpu.memory_space<smem>>
    %44 = vector.broadcast %43 : f32 to vector<1x128xf32>
    %45 = arith.addf %42, %44 : vector<1x128xf32>
    %cst_24 = arith.constant 0.000000e+00 : f32
    %46 = vector.broadcast %cst_24 : f32 to vector<1x128xf32>
    %47 = arith.cmpf ogt, %45, %46 : vector<1x128xf32>
    %cst_25 = arith.constant 0.00999999977 : f32
    %48 = vector.broadcast %cst_25 : f32 to vector<1x128xf32>
    %49 = arith.mulf %48, %45 : vector<1x128xf32>
    %50 = arith.select %47, %45, %49 : vector<1x128xi1>, vector<1x128xf32>
    %c0_26 = arith.constant 0 : index
    %c0_27 = arith.constant 0 : index
    %51 = vector.load %arg8[%c0_26, %c0_27] : memref<1x128xf32, #tpu.memory_space<vmem>>, vector<1x128xf32>
    tpu.vector_store %arg8[%c0_26, %c0_27], %50 {strides = array<i32>} : memref<1x128xf32, #tpu.memory_space<vmem>>, vector<1x128xf32>,
    return
  }
  func.func @transform_0(%arg0: i32) -> (i32, i32) {
    %c0_i32 = arith.constant 0 : i32
    %c0_i32_0 = arith.constant 0 : i32
    return %c0_i32, %arg0 : i32, i32
  }
  func.func @transform_1(%arg0: i32) -> (i32, i32) {
    %c0_i32 = arith.constant 0 : i32
    %c0_i32_0 = arith.constant 0 : i32
    %c0_i32_1 = arith.constant 0 : i32
    return %c0_i32, %c0_i32_0 : i32, i32
  }
  func.func @transform_2(%arg0: i32) -> (i32, i32) {
    %c0_i32 = arith.constant 0 : i32
    %c0_i32_0 = arith.constant 0 : i32
    %c0_i32_1 = arith.constant 0 : i32
    return %c0_i32, %c0_i32_0 : i32, i32
  }
  func.func @transform_3(%arg0: i32) -> (i32, i32) {
    %c0_i32 = arith.constant 0 : i32
    %c0_i32_0 = arith.constant 0 : i32
    %c0_i32_1 = arith.constant 0 : i32
    return %c0_i32, %c0_i32_0 : i32, i32
  }
  func.func @transform_4(%arg0: i32) -> (i32, i32) {
    %c0_i32 = arith.constant 0 : i32
    %c0_i32_0 = arith.constant 0 : i32
    %c0_i32_1 = arith.constant 0 : i32
    return %c0_i32, %c0_i32_0 : i32, i32
  }
  func.func @transform_5(%arg0: i32) -> (i32, i32) {
    %c0_i32 = arith.constant 0 : i32
    %c0_i32_0 = arith.constant 0 : i32
    %c0_i32_1 = arith.constant 0 : i32
    return %c0_i32, %c0_i32_0 : i32, i32
  }
  func.func @transform_6(%arg0: i32) -> i32 {
    %c0_i32 = arith.constant 0 : i32
    %c0_i32_0 = arith.constant 0 : i32
    return %c0_i32 : i32
  }
  func.func @transform_7(%arg0: i32) -> (i32, i32) {
    %c0_i32 = arith.constant 0 : i32
    %c0_i32_0 = arith.constant 0 : i32
    return %c0_i32, %arg0 : i32, i32
  }
}

</mosaic_0001>

<llo_original>
// kernel: _lse_core.1
$region0: #{_lse_core.1}
  #allocation0 [shape = 'u32[]', space=smem, size = 0x4, offset = 0x4, fixed_abs, tag = 'smem constant byte address 0x4 - core index']
  #allocation1 [shape = 'u32[144,128]{1,0:T(1,128)}', space=vmem, size = 0x12000, scoped, tag = 'internal scratch']
  #allocation2 [shape = 'f32[1]{0:T(128)S(6)}', space=smem, size = 0x200, scoped, tag = 'scoped memory for _lse_core.1']
  %s0 = inlined_call_operand.vmem [shape: f32[32,16], index: 0, kind: input, shape index: {}]
  %s1 = inlined_call_operand.vmem [shape: f32[128,32], index: 1, kind: input, shape index: {}]
  %s2 = inlined_call_operand.vmem [shape: f32[128,1], index: 2, kind: input, shape index: {}]
  %s3 = inlined_call_operand.vmem [shape: f32[128,128], index: 3, kind: input, shape index: {}]
  %s4 = inlined_call_operand.vmem [shape: f32[128,1], index: 4, kind: input, shape index: {}]
  %s5 = inlined_call_operand.vmem [shape: f32[1,128], index: 5, kind: input, shape index: {}]
  %s6 = inlined_call_operand.<no memory space> [shape: f32[1], index: 6, kind: input, shape index: {}]
  %s7 = inlined_call_operand.hbm [shape: f32[1,16], index: 7, kind: output, shape index: {}]
  %s8 = sld [smem:[#allocation0]]
  $region38: #{_lse_core.1} parent=0
    _
  %s10 = ssub.s32 1, %s8
  %s11 = scalar_select 0, %s10, %s8
  %12 = sst [smem:[#allocation2]] %s6
  $region1: #{_lse_core.1} parent=0
    #allocation3 [shape = 'u8[512]{0}', space=vmem, size = 0x400, scoped, tag = 'output window, operand 0, single buffered']
    #allocation4 [shape = 's32[1]{0}', space=sflag, size = 0x4, scoped, tag = 'scoped memory for _lse_core.1']
    %13 = vsyncpa [#allocation4], 0
    // Predicated region
    $region2: #{_lse_core.1} parent=1 // pred_check
      _
    $region3: #{_lse_core.1} parent=1 // pred_check_branch
      %15 = sbr.rel (0) target = $region5
    $region4: #{_lse_core.1} parent=1 // pred_region
      _
    $region5: #{_lse_core.1} parent=1 // pred_fallthru
      _
    // Predicated region
    $region6: #{_lse_core.1} parent=1 // pred_check
      _
    $region7: #{_lse_core.1} parent=1 // pred_check_branch
      %17 = sbr.rel (0) target = $region9
    $region8: #{_lse_core.1} parent=1 // pred_region
      _
    $region9: #{_lse_core.1} parent=1 // pred_fallthru
      _
    // Predicated region
    $region10: #{_lse_core.1} parent=1 // pred_check
      _
    $region11: #{_lse_core.1} parent=1 // pred_check_branch
      %19 = sbr.rel (0) target = $region13
    $region12: #{_lse_core.1} parent=1 // pred_region
      _
    $region13: #{_lse_core.1} parent=1 // pred_fallthru
      _
    // Predicated region
    $region14: #{_lse_core.1} parent=1 // pred_check
      _
    $region15: #{_lse_core.1} parent=1 // pred_check_branch
      %21 = sbr.rel (0) target = $region17
    $region16: #{_lse_core.1} parent=1 // pred_region
      _
    $region17: #{_lse_core.1} parent=1 // pred_fallthru
      _
    // Predicated region
    $region18: #{_lse_core.1} parent=1 // pred_check
      _
    $region19: #{_lse_core.1} parent=1 // pred_check_branch
      %23 = sbr.rel (0) target = $region21
    $region20: #{_lse_core.1} parent=1 // pred_region
      _
    $region21: #{_lse_core.1} parent=1 // pred_fallthru
      _
    // Predicated region
    $region22: #{_lse_core.1} parent=1 // pred_check
      _
    $region23: #{_lse_core.1} parent=1 // pred_check_branch
      %25 = sbr.rel (0) target = $region25
    $region24: #{_lse_core.1} parent=1 // pred_region
      _
    $region25: #{_lse_core.1} parent=1 // pred_fallthru
      _
    // Predicated region
    $region26: #{_lse_core.1} parent=1 // pred_check
      _
    $region27: #{_lse_core.1} parent=1 // pred_check_branch
      %27 = sbr.rel (0) target = $region29
    $region28: #{_lse_core.1} parent=1 // pred_region
      _
    $region29: #{_lse_core.1} parent=1 // pred_fallthru
      _
    %v28 = vld [vmem:[%s1] sm:$0xff]
    %v29 = vld [vmem:[%s1 + $0x8] sm:$0xff]
    %v30 = vld [vmem:[%s1 + $0x10] sm:$0xff]
    %v31 = vld [vmem:[%s1 + $0x18] sm:$0xff]
    %v32 = vld [vmem:[%s1 + $0x20] sm:$0xff]
    %v33 = vld [vmem:[%s1 + $0x28] sm:$0xff]
    %v34 = vld [vmem:[%s1 + $0x30] sm:$0xff]
    %v35 = vld [vmem:[%s1 + $0x38] sm:$0xff]
    %v36 = vld [vmem:[%s1 + $0x40] sm:$0xff]
    %v37 = vld [vmem:[%s1 + $0x48] sm:$0xff]
    %v38 = vld [vmem:[%s1 + $0x50] sm:$0xff]
    %v39 = vld [vmem:[%s1 + $0x58] sm:$0xff]
    %v40 = vld [vmem:[%s1 + $0x60] sm:$0xff]
    %v41 = vld [vmem:[%s1 + $0x68] sm:$0xff]
    %v42 = vld [vmem:[%s1 + $0x70] sm:$0xff]
    %v43 = vld [vmem:[%s1 + $0x78] sm:$0xff]
    %v44 = vld [vmem:[%s0] sm:$0xff]
    %v45 = vld [vmem:[%s0 + $0x8] sm:$0xff]
    %v46 = vld [vmem:[%s0 + $0x10] sm:$0xff]
    %v47 = vld [vmem:[%s0 + $0x18] sm:$0xff]
    %v48 = vld [vmem:[%s2] sm:$0xff]
    %v49 = vld [vmem:[%s2 + $0x8] sm:$0xff]
    %v50 = vld [vmem:[%s2 + $0x10] sm:$0xff]
    %v51 = vld [vmem:[%s2 + $0x18] sm:$0xff]
    %v52 = vld [vmem:[%s2 + $0x20] sm:$0xff]
    %v53 = vld [vmem:[%s2 + $0x28] sm:$0xff]
    %v54 = vld [vmem:[%s2 + $0x30] sm:$0xff]
    %v55 = vld [vmem:[%s2 + $0x38] sm:$0xff]
    %v56 = vld [vmem:[%s2 + $0x40] sm:$0xff]
    %v57 = vld [vmem:[%s2 + $0x48] sm:$0xff]
    %v58 = vld [vmem:[%s2 + $0x50] sm:$0xff]
    %v59 = vld [vmem:[%s2 + $0x58] sm:$0xff]
    %v60 = vld [vmem:[%s2 + $0x60] sm:$0xff]
    %v61 = vld [vmem:[%s2 + $0x68] sm:$0xff]
    %v62 = vld [vmem:[%s2 + $0x70] sm:$0xff]
    %v63 = vld [vmem:[%s2 + $0x78] sm:$0xff]
    %65 = vset.pattern.permute.xlu0 0
    %66 = vperm.xlu0 %65, %v48
    %v67 = vpop.permute.xlu0 %66
    %70 = vset.pattern.permute.xlu0 0
    %71 = vperm.xlu0 %70, %v49
    %v72 = vpop.permute.xlu0 %71
    %75 = vset.pattern.permute.xlu0 0
    %76 = vperm.xlu0 %75, %v50
    %v77 = vpop.permute.xlu0 %76
    %80 = vset.pattern.permute.xlu0 0
    %81 = vperm.xlu0 %80, %v51
    %v82 = vpop.permute.xlu0 %81
    %85 = vset.pattern.permute.xlu0 0
    %86 = vperm.xlu0 %85, %v52
    %v87 = vpop.permute.xlu0 %86
    %90 = vset.pattern.permute.xlu0 0
    %91 = vperm.xlu0 %90, %v53
    %v92 = vpop.permute.xlu0 %91
    %95 = vset.pattern.permute.xlu0 0
    %96 = vperm.xlu0 %95, %v54
    %v97 = vpop.permute.xlu0 %96
    %100 = vset.pattern.permute.xlu0 0
    %101 = vperm.xlu0 %100, %v55
    %v102 = vpop.permute.xlu0 %101
    %105 = vset.pattern.permute.xlu0 0
    %106 = vperm.xlu0 %105, %v56
    %v107 = vpop.permute.xlu0 %106
    %110 = vset.pattern.permute.xlu0 0
    %111 = vperm.xlu0 %110, %v57
    %v112 = vpop.permute.xlu0 %111
    %115 = vset.pattern.permute.xlu0 0
    %116 = vperm.xlu0 %115, %v58
    %v117 = vpop.permute.xlu0 %116
    %120 = vset.pattern.permute.xlu0 0
    %121 = vperm.xlu0 %120, %v59
    %v122 = vpop.permute.xlu0 %121
    %125 = vset.pattern.permute.xlu0 0
    %126 = vperm.xlu0 %125, %v60
    %v127 = vpop.permute.xlu0 %126
    %130 = vset.pattern.permute.xlu0 0
    %131 = vperm.xlu0 %130, %v61
    %v132 = vpop.permute.xlu0 %131
    %135 = vset.pattern.permute.xlu0 0
    %136 = vperm.xlu0 %135, %v62
    %v137 = vpop.permute.xlu0 %136
    %140 = vset.pattern.permute.xlu0 0
    %141 = vperm.xlu0 %140, %v63
    %v142 = vpop.permute.xlu0 %141
    %vm144 = vcmask 261120
    %v146 = vsel %vm144, %v28, 0
    %v149 = vsel %vm144, %v29, 0
    %v152 = vsel %vm144, %v30, 0
    %v155 = vsel %vm144, %v31, 0
    %v158 = vsel %vm144, %v32, 0
    %v161 = vsel %vm144, %v33, 0
    %v164 = vsel %vm144, %v34, 0
    %v167 = vsel %vm144, %v35, 0
    %v170 = vsel %vm144, %v36, 0
    %v173 = vsel %vm144, %v37, 0
    %v176 = vsel %vm144, %v38, 0
    %v179 = vsel %vm144, %v39, 0
    %v182 = vsel %vm144, %v40, 0
    %v185 = vsel %vm144, %v41, 0
    %v188 = vsel %vm144, %v42, 0
    %v191 = vsel %vm144, %v43, 0
    %193 = vmatprep.subr.mxu0 0.0
    %194 = vmatpush1.msra.mxu0 %v44
    %195 = vmatprep.subr.mxu0 0.0
    %196 = vmatpush1.msra.mxu0 %v45
    %197 = vmatprep.subr.mxu0 0.0
    %198 = vmatpush1.msra.mxu0 %v46
    %199 = vmatprep.subr.mxu0 0.0
    %200 = vmatpush1.msra.mxu0 %v47
    %201 = vmatprep.subr.mxu0 0.0
    %202 = vmatpush1.msra.mxu0 0.0
    %203 = vmatprep.subr.mxu0 0.0
    %204 = vmatpush1.msra.mxu0 0.0
    %205 = vmatprep.subr.mxu0 0.0
    %206 = vmatpush1.msra.mxu0 0.0
    %207 = vmatprep.subr.mxu0 0.0
    %208 = vmatpush1.msra.mxu0 0.0
    %209 = vmatprep.subr.mxu0 0.0
    %210 = vmatpush1.msra.mxu0 0.0
    %211 = vmatprep.subr.mxu0 0.0
    %212 = vmatpush1.msra.mxu0 0.0
    %213 = vmatprep.subr.mxu0 0.0
    %214 = vmatpush1.msra.mxu0 0.0
    %215 = vmatprep.subr.mxu0 0.0
    %216 = vmatpush1.msra.mxu0 0.0
    %217 = vmatprep.subr.mxu0 0.0
    %218 = vmatpush1.msra.mxu0 0.0
    %219 = vmatprep.subr.mxu0 0.0
    %220 = vmatpush1.msra.mxu0 0.0
    %221 = vmatprep.subr.mxu0 0.0
    %222 = vmatpush1.msra.mxu0 0.0
    %223 = vmatprep.subr.mxu0 0.0
    %224 = vmatpush1.msra.mxu0 0.0
    %225 = vmatprep.subr.mxu0 0.0
    %226 = vmatpush1.msra.mxu0 0.0
    %227 = vmatprep.subr.mxu0 0.0
    %228 = vmatpush1.msra.mxu0 0.0
    %229 = vmatprep.subr.mxu0 0.0
    %230 = vmatpush1.msra.mxu0 0.0
    %231 = vmatprep.subr.mxu0 0.0
    %232 = vmatpush1.msra.mxu0 0.0
    %233 = vmatprep.subr.mxu0 0.0
    %234 = vmatpush1.msra.mxu0 0.0
    %235 = vmatprep.subr.mxu0 0.0
    %236 = vmatpush1.msra.mxu0 0.0
    %237 = vmatprep.subr.mxu0 0.0
    %238 = vmatpush1.msra.mxu0 0.0
    %239 = vmatprep.subr.mxu0 0.0
    %240 = vmatpush1.msra.mxu0 0.0
    %241 = vmatprep.subr.mxu0 0.0
    %242 = vmatpush1.msra.mxu0 0.0
    %243 = vmatprep.subr.mxu0 0.0
    %244 = vmatpush1.msra.mxu0 0.0
    %245 = vmatprep.subr.mxu0 0.0
    %246 = vmatpush1.msra.mxu0 0.0
    %247 = vmatprep.subr.mxu0 0.0
    %248 = vmatpush1.msra.mxu0 0.0
    %249 = vmatprep.subr.mxu0 0.0
    %250 = vmatpush1.msra.mxu0 0.0
    %251 = vmatprep.subr.mxu0 0.0
    %252 = vmatpush1.msra.mxu0 0.0
    %253 = vmatprep.subr.mxu0 0.0
    %254 = vmatpush1.msra.mxu0 0.0
    %255 = vmatprep.subr.mxu0 0.0
    %256 = vmatpush1.msra.mxu0 0.0
    %257 = vmatprep.mubr.f32.mxu0 0.0
    %258 = vmatmul.mubr.f32.gmra.mrb[0].mxu0 %v146
    %v259 = vpop.f32.mrb[0].mxu0
    %v260 = vadd.f32 %v67, %v259
    %v261 = vpop.f32.mrb[0].mxu0
    %262 = vmatprep.mubr.f32.mxu0 0.0
    %263 = vmatmul.mubr.f32.gmra.mrb[0].mxu0 %v149
    %v264 = vpop.f32.mrb[0].mxu0
    %v265 = vadd.f32 %v72, %v264
    %v266 = vpop.f32.mrb[0].mxu0
    %267 = vmatprep.mubr.f32.mxu0 0.0
    %268 = vmatmul.mubr.f32.gmra.mrb[0].mxu0 %v152
    %v269 = vpop.f32.mrb[0].mxu0
    %v270 = vadd.f32 %v77, %v269
    %v271 = vpop.f32.mrb[0].mxu0
    %272 = vmatprep.mubr.f32.mxu0 0.0
    %273 = vmatmul.mubr.f32.gmra.mrb[0].mxu0 %v155
    %v274 = vpop.f32.mrb[0].mxu0
    %v275 = vadd.f32 %v82, %v274
    %v276 = vpop.f32.mrb[0].mxu0
    %277 = vmatprep.mubr.f32.mxu0 0.0
    %278 = vmatmul.mubr.f32.gmra.mrb[0].mxu0 %v158
    %v279 = vpop.f32.mrb[0].mxu0
    %v280 = vadd.f32 %v87, %v279
    %v281 = vpop.f32.mrb[0].mxu0
    %282 = vmatprep.mubr.f32.mxu0 0.0
    %283 = vmatmul.mubr.f32.gmra.mrb[0].mxu0 %v161
    %v284 = vpop.f32.mrb[0].mxu0
    %v285 = vadd.f32 %v92, %v284
    %v286 = vpop.f32.mrb[0].mxu0
    %287 = vmatprep.mubr.f32.mxu0 0.0
    %288 = vmatmul.mubr.f32.gmra.mrb[0].mxu0 %v164
    %v289 = vpop.f32.mrb[0].mxu0
    %v290 = vadd.f32 %v97, %v289
    %v291 = vpop.f32.mrb[0].mxu0
    %292 = vmatprep.mubr.f32.mxu0 0.0
    %293 = vmatmul.mubr.f32.gmra.mrb[0].mxu0 %v167
    %v294 = vpop.f32.mrb[0].mxu0
    %v295 = vadd.f32 %v102, %v294
    %v296 = vpop.f32.mrb[0].mxu0
    %297 = vmatprep.mubr.f32.mxu0 0.0
    %298 = vmatmul.mubr.f32.gmra.mrb[0].mxu0 %v170
    %v299 = vpop.f32.mrb[0].mxu0
    %v300 = vadd.f32 %v107, %v299
    %v301 = vpop.f32.mrb[0].mxu0
    %302 = vmatprep.mubr.f32.mxu0 0.0
    %303 = vmatmul.mubr.f32.gmra.mrb[0].mxu0 %v173
    %v304 = vpop.f32.mrb[0].mxu0
    %v305 = vadd.f32 %v112, %v304
    %v306 = vpop.f32.mrb[0].mxu0
    %307 = vmatprep.mubr.f32.mxu0 0.0
    %308 = vmatmul.mubr.f32.gmra.mrb[0].mxu0 %v176
    %v309 = vpop.f32.mrb[0].mxu0
    %v310 = vadd.f32 %v117, %v309
    %v311 = vpop.f32.mrb[0].mxu0
    %312 = vmatprep.mubr.f32.mxu0 0.0
    %313 = vmatmul.mubr.f32.gmra.mrb[0].mxu0 %v179
    %v314 = vpop.f32.mrb[0].mxu0
    %v315 = vadd.f32 %v122, %v314
    %v316 = vpop.f32.mrb[0].mxu0
    %317 = vmatprep.mubr.f32.mxu0 0.0
    %318 = vmatmul.mubr.f32.gmra.mrb[0].mxu0 %v182
    %v319 = vpop.f32.mrb[0].mxu0
    %v320 = vadd.f32 %v127, %v319
    %v321 = vpop.f32.mrb[0].mxu0
    %322 = vmatprep.mubr.f32.mxu0 0.0
    %323 = vmatmul.mubr.f32.gmra.mrb[0].mxu0 %v185
    %v324 = vpop.f32.mrb[0].mxu0
    %v325 = vadd.f32 %v132, %v324
    %v326 = vpop.f32.mrb[0].mxu0
    %327 = vmatprep.mubr.f32.mxu0 0.0
    %328 = vmatmul.mubr.f32.gmra.mrb[0].mxu0 %v188
    %v329 = vpop.f32.mrb[0].mxu0
    %v330 = vadd.f32 %v137, %v329
    %v331 = vpop.f32.mrb[0].mxu0
    %332 = vmatprep.mubr.f32.mxu0 0.0
    %333 = vmatmul.mubr.f32.gmra.mrb[0].mxu0 %v191
    %v334 = vpop.f32.mrb[0].mxu0
    %v335 = vadd.f32 %v142, %v334
    %v336 = vpop.f32.mrb[0].mxu0
    %337 = vdwg.mxu0
    %v338 = vmul.f32 %v260, %v260
    %v339 = vmul.f32 %v265, %v265
    %v340 = vmul.f32 %v270, %v270
    %v341 = vmul.f32 %v275, %v275
    %v342 = vmul.f32 %v280, %v280
    %v343 = vmul.f32 %v285, %v285
    %v344 = vmul.f32 %v290, %v290
    %v345 = vmul.f32 %v295, %v295
    %v346 = vmul.f32 %v300, %v300
    %v347 = vmul.f32 %v305, %v305
    %v348 = vmul.f32 %v310, %v310
    %v349 = vmul.f32 %v315, %v315
    %v350 = vmul.f32 %v320, %v320
    %v351 = vmul.f32 %v325, %v325
    %v352 = vmul.f32 %v330, %v330
    %v353 = vmul.f32 %v335, %v335
    %v354 = vadd.f32 %v338, %v339
    %v355 = vadd.f32 %v354, %v340
    %v356 = vadd.f32 %v355, %v341
    %v357 = vadd.f32 %v356, %v342
    %v358 = vadd.f32 %v357, %v343
    %v359 = vadd.f32 %v358, %v344
    %v360 = vadd.f32 %v359, %v345
    %v361 = vadd.f32 %v360, %v346
    %v362 = vadd.f32 %v361, %v347
    %v363 = vadd.f32 %v362, %v348
    %v364 = vadd.f32 %v363, %v349
    %v365 = vadd.f32 %v364, %v350
    %v366 = vadd.f32 %v365, %v351
    %v367 = vadd.f32 %v366, %v352
    %v368 = vadd.f32 %v367, %v353
    %v369 = vrot.slane %v368, 4
    %v370 = vadd.f32 %v368, %v369
    %v371 = vrot.slane %v370, 2
    %v372 = vadd.f32 %v370, %v371
    %v373 = vrot.slane %v372, 1
    %v374 = vadd.f32 %v372, %v373
    %v375 = vrcp.pop 128.0
    %v376 = vmul.f32 %v374, %v375
    %v377 = vadd.f32 %v376, 1e-05
    %v378 = vrsqrt.pop %v377
    %v379 = vmul.f32 %v260, %v378
    %v380 = vmul.f32 %v265, %v378
    %v381 = vmul.f32 %v270, %v378
    %v382 = vmul.f32 %v275, %v378
    %v383 = vmul.f32 %v280, %v378
    %v384 = vmul.f32 %v285, %v378
    %v385 = vmul.f32 %v290, %v378
    %v386 = vmul.f32 %v295, %v378
    %v387 = vmul.f32 %v300, %v378
    %v388 = vmul.f32 %v305, %v378
    %v389 = vmul.f32 %v310, %v378
    %v390 = vmul.f32 %v315, %v378
    %v391 = vmul.f32 %v320, %v378
    %v392 = vmul.f32 %v325, %v378
    %v393 = vmul.f32 %v330, %v378
    %v394 = vmul.f32 %v335, %v378
    %vm395 = vcmp.gt.f32.partialorder %v379, 0.0
    %vm396 = vcmp.gt.f32.partialorder %v380, 0.0
    %vm397 = vcmp.gt.f32.partialorder %v381, 0.0
    %vm398 = vcmp.gt.f32.partialorder %v382, 0.0
    %vm399 = vcmp.gt.f32.partialorder %v383, 0.0
    %vm400 = vcmp.gt.f32.partialorder %v384, 0.0
    %vm401 = vcmp.gt.f32.partialorder %v385, 0.0
    %vm402 = vcmp.gt.f32.partialorder %v386, 0.0
    %vm403 = vcmp.gt.f32.partialorder %v387, 0.0
    %vm404 = vcmp.gt.f32.partialorder %v388, 0.0
    %vm405 = vcmp.gt.f32.partialorder %v389, 0.0
    %vm406 = vcmp.gt.f32.partialorder %v390, 0.0
    %vm407 = vcmp.gt.f32.partialorder %v391, 0.0
    %vm408 = vcmp.gt.f32.partialorder %v392, 0.0
    %vm409 = vcmp.gt.f32.partialorder %v393, 0.0
    %vm410 = vcmp.gt.f32.partialorder %v394, 0.0
    %v411 = vmul.f32 %v379, 0.01
    %v412 = vmul.f32 %v380, 0.01
    %v413 = vmul.f32 %v381, 0.01
    %v414 = vmul.f32 %v382, 0.01
    %v415 = vmul.f32 %v383, 0.01
    %v416 = vmul.f32 %v384, 0.01
    %v417 = vmul.f32 %v385, 0.01
    %v418 = vmul.f32 %v386, 0.01
    %v419 = vmul.f32 %v387, 0.01
    %v420 = vmul.f32 %v388, 0.01
    %v421 = vmul.f32 %v389, 0.01
    %v422 = vmul.f32 %v390, 0.01
    %v423 = vmul.f32 %v391, 0.01
    %v424 = vmul.f32 %v392, 0.01
    %v425 = vmul.f32 %v393, 0.01
    %v426 = vmul.f32 %v394, 0.01
    %v427 = vsel %vm395, %v379, %v411
    %v428 = vsel %vm396, %v380, %v412
    %v429 = vsel %vm397, %v381, %v413
    %v430 = vsel %vm398, %v382, %v414
    %v431 = vsel %vm399, %v383, %v415
    %v432 = vsel %vm400, %v384, %v416
    %v433 = vsel %vm401, %v385, %v417
    %v434 = vsel %vm402, %v386, %v418
    %v435 = vsel %vm403, %v387, %v419
    %v436 = vsel %vm404, %v388, %v420
    %v437 = vsel %vm405, %v389, %v421
    %v438 = vsel %vm406, %v390, %v422
    %v439 = vsel %vm407, %v391, %v423
    %v440 = vsel %vm408, %v392, %v424
    %v441 = vsel %vm409, %v393, %v425
    %v442 = vsel %vm410, %v394, %v426
    %v443 = vld [vmem:[%s3] sm:$0xff]
    %v444 = vld [vmem:[%s3 + $0x8] sm:$0xff]
    %v445 = vld [vmem:[%s3 + $0x10] sm:$0xff]
    %v446 = vld [vmem:[%s3 + $0x18] sm:$0xff]
    %v447 = vld [vmem:[%s3 + $0x20] sm:$0xff]
    %v448 = vld [vmem:[%s3 + $0x28] sm:$0xff]
    %v449 = vld [vmem:[%s3 + $0x30] sm:$0xff]
    %v450 = vld [vmem:[%s3 + $0x38] sm:$0xff]
    %v451 = vld [vmem:[%s3 + $0x40] sm:$0xff]
    %v452 = vld [vmem:[%s3 + $0x48] sm:$0xff]
    %v453 = vld [vmem:[%s3 + $0x50] sm:$0xff]
    %v454 = vld [vmem:[%s3 + $0x58] sm:$0xff]
    %v455 = vld [vmem:[%s3 + $0x60] sm:$0xff]
    %v456 = vld [vmem:[%s3 + $0x68] sm:$0xff]
    %v457 = vld [vmem:[%s3 + $0x70] sm:$0xff]
    %v458 = vld [vmem:[%s3 + $0x78] sm:$0xff]
    %v459 = vld [vmem:[%s4] sm:$0xff]
    %v460 = vld [vmem:[%s4 + $0x8] sm:$0xff]
    %v461 = vld [vmem:[%s4 + $0x10] sm:$0xff]
    %v462 = vld [vmem:[%s4 + $0x18] sm:$0xff]
    %v463 = vld [vmem:[%s4 + $0x20] sm:$0xff]
    %v464 = vld [vmem:[%s4 + $0x28] sm:$0xff]
    %v465 = vld [vmem:[%s4 + $0x30] sm:$0xff]
    %v466 = vld [vmem:[%s4 + $0x38] sm:$0xff]
    %v467 = vld [vmem:[%s4 + $0x40] sm:$0xff]
    %v468 = vld [vmem:[%s4 + $0x48] sm:$0xff]
    %v469 = vld [vmem:[%s4 + $0x50] sm:$0xff]
    %v470 = vld [vmem:[%s4 + $0x58] sm:$0xff]
    %v471 = vld [vmem:[%s4 + $0x60] sm:$0xff]
    %v472 = vld [vmem:[%s4 + $0x68] sm:$0xff]
    %v473 = vld [vmem:[%s4 + $0x70] sm:$0xff]
    %v474 = vld [vmem:[%s4 + $0x78] sm:$0xff]
    %476 = vset.pattern.permute.xlu0 0
    %477 = vperm.xlu0 %476, %v459
    %v478 = vpop.permute.xlu0 %477
    %481 = vset.pattern.permute.xlu0 0
    %482 = vperm.xlu0 %481, %v460
    %v483 = vpop.permute.xlu0 %482
    %486 = vset.pattern.permute.xlu0 0
    %487 = vperm.xlu0 %486, %v461
    %v488 = vpop.permute.xlu0 %487
    %491 = vset.pattern.permute.xlu0 0
    %492 = vperm.xlu0 %491, %v462
    %v493 = vpop.permute.xlu0 %492
    %496 = vset.pattern.permute.xlu0 0
    %497 = vperm.xlu0 %496, %v463
    %v498 = vpop.permute.xlu0 %497
    %501 = vset.pattern.permute.xlu0 0
    %502 = vperm.xlu0 %501, %v464
    %v503 = vpop.permute.xlu0 %502
    %506 = vset.pattern.permute.xlu0 0
    %507 = vperm.xlu0 %506, %v465
    %v508 = vpop.permute.xlu0 %507
    %511 = vset.pattern.permute.xlu0 0
    %512 = vperm.xlu0 %511, %v466
    %v513 = vpop.permute.xlu0 %512
    %516 = vset.pattern.permute.xlu0 0
    %517 = vperm.xlu0 %516, %v467
    %v518 = vpop.permute.xlu0 %517
    %521 = vset.pattern.permute.xlu0 0
    %522 = vperm.xlu0 %521, %v468
    %v523 = vpop.permute.xlu0 %522
    %526 = vset.pattern.permute.xlu0 0
    %527 = vperm.xlu0 %526, %v469
    %v528 = vpop.permute.xlu0 %527
    %531 = vset.pattern.permute.xlu0 0
    %532 = vperm.xlu0 %531, %v470
    %v533 = vpop.permute.xlu0 %532
    %536 = vset.pattern.permute.xlu0 0
    %537 = vperm.xlu0 %536, %v471
    %v538 = vpop.permute.xlu0 %537
    %541 = vset.pattern.permute.xlu0 0
    %542 = vperm.xlu0 %541, %v472
    %v543 = vpop.permute.xlu0 %542
    %546 = vset.pattern.permute.xlu0 0
    %547 = vperm.xlu0 %546, %v473
    %v548 = vpop.permute.xlu0 %547
    %551 = vset.pattern.permute.xlu0 0
    %552 = vperm.xlu0 %551, %v474
    %v553 = vpop.permute.xlu0 %552
    %555 = vmatprep.subr.mxu0 0.0
    %556 = vmatpush1.msra.mxu0 %v427
    %557 = vmatprep.subr.mxu0 0.0
    %558 = vmatpush1.msra.mxu0 %v428
    %559 = vmatprep.subr.mxu0 0.0
    %560 = vmatpush1.msra.mxu0 %v429
    %561 = vmatprep.subr.mxu0 0.0
    %562 = vmatpush1.msra.mxu0 %v430
    %563 = vmatprep.subr.mxu0 0.0
    %564 = vmatpush1.msra.mxu0 %v431
    %565 = vmatprep.subr.mxu0 0.0
    %566 = vmatpush1.msra.mxu0 %v432
    %567 = vmatprep.subr.mxu0 0.0
    %568 = vmatpush1.msra.mxu0 %v433
    %569 = vmatprep.subr.mxu0 0.0
    %570 = vmatpush1.msra.mxu0 %v434
    %571 = vmatprep.subr.mxu0 0.0
    %572 = vmatpush1.msra.mxu0 %v435
    %573 = vmatprep.subr.mxu0 0.0
    %574 = vmatpush1.msra.mxu0 %v436
    %575 = vmatprep.subr.mxu0 0.0
    %576 = vmatpush1.msra.mxu0 %v437
    %577 = vmatprep.subr.mxu0 0.0
    %578 = vmatpush1.msra.mxu0 %v438
    %579 = vmatprep.subr.mxu0 0.0
    %580 = vmatpush1.msra.mxu0 %v439
    %581 = vmatprep.subr.mxu0 0.0
    %582 = vmatpush1.msra.mxu0 %v440
    %583 = vmatprep.subr.mxu0 0.0
    %584 = vmatpush1.msra.mxu0 %v441
    %585 = vmatprep.subr.mxu0 0.0
    %586 = vmatpush1.msra.mxu0 %v442
    %587 = vmatprep.subr.mxu0 0.0
    %588 = vmatpush1.msra.mxu0 0.0
    %589 = vmatprep.subr.mxu0 0.0
    %590 = vmatpush1.msra.mxu0 0.0
    %591 = vmatprep.subr.mxu0 0.0
    %592 = vmatpush1.msra.mxu0 0.0
    %593 = vmatprep.subr.mxu0 0.0
    %594 = vmatpush1.msra.mxu0 0.0
    %595 = vmatprep.subr.mxu0 0.0
    %596 = vmatpush1.msra.mxu0 0.0
    %597 = vmatprep.subr.mxu0 0.0
    %598 = vmatpush1.msra.mxu0 0.0
    %599 = vmatprep.subr.mxu0 0.0
    %600 = vmatpush1.msra.mxu0 0.0
    %601 = vmatprep.subr.mxu0 0.0
    %602 = vmatpush1.msra.mxu0 0.0
    %603 = vmatprep.subr.mxu0 0.0
    %604 = vmatpush1.msra.mxu0 0.0
    %605 = vmatprep.subr.mxu0 0.0
    %606 = vmatpush1.msra.mxu0 0.0
    %607 = vmatprep.subr.mxu0 0.0
    %608 = vmatpush1.msra.mxu0 0.0
    %609 = vmatprep.subr.mxu0 0.0
    %610 = vmatpush1.msra.mxu0 0.0
    %611 = vmatprep.subr.mxu0 0.0
    %612 = vmatpush1.msra.mxu0 0.0
    %613 = vmatprep.subr.mxu0 0.0
    %614 = vmatpush1.msra.mxu0 0.0
    %615 = vmatprep.subr.mxu0 0.0
    %616 = vmatpush1.msra.mxu0 0.0
    %617 = vmatprep.subr.mxu0 0.0
    %618 = vmatpush1.msra.mxu0 0.0
    %619 = vmatprep.mubr.f32.mxu0 0.0
    %620 = vmatmul.mubr.f32.gmra.mrb[0].mxu0 %v443
    %v621 = vpop.f32.mrb[0].mxu0
    %v622 = vadd.f32 %v478, %v621
    %v623 = vpop.f32.mrb[0].mxu0
    %624 = vmatprep.mubr.f32.mxu0 0.0
    %625 = vmatmul.mubr.f32.gmra.mrb[0].mxu0 %v444
    %v626 = vpop.f32.mrb[0].mxu0
    %v627 = vadd.f32 %v483, %v626
    %v628 = vpop.f32.mrb[0].mxu0
    %629 = vmatprep.mubr.f32.mxu0 0.0
    %630 = vmatmul.mubr.f32.gmra.mrb[0].mxu0 %v445
    %v631 = vpop.f32.mrb[0].mxu0
    %v632 = vadd.f32 %v488, %v631
    %v633 = vpop.f32.mrb[0].mxu0
    %634 = vmatprep.mubr.f32.mxu0 0.0
    %635 = vmatmul.mubr.f32.gmra.mrb[0].mxu0 %v446
    %v636 = vpop.f32.mrb[0].mxu0
    %v637 = vadd.f32 %v493, %v636
    %v638 = vpop.f32.mrb[0].mxu0
    %639 = vmatprep.mubr.f32.mxu0 0.0
    %640 = vmatmul.mubr.f32.gmra.mrb[0].mxu0 %v447
    %v641 = vpop.f32.mrb[0].mxu0
    %v642 = vadd.f32 %v498, %v641
    %v643 = vpop.f32.mrb[0].mxu0
    %644 = vmatprep.mubr.f32.mxu0 0.0
    %645 = vmatmul.mubr.f32.gmra.mrb[0].mxu0 %v448
    %v646 = vpop.f32.mrb[0].mxu0
    %v647 = vadd.f32 %v503, %v646
    %v648 = vpop.f32.mrb[0].mxu0
    %649 = vmatprep.mubr.f32.mxu0 0.0
    %650 = vmatmul.mubr.f32.gmra.mrb[0].mxu0 %v449
    %v651 = vpop.f32.mrb[0].mxu0
    %v652 = vadd.f32 %v508, %v651
    %v653 = vpop.f32.mrb[0].mxu0
    %654 = vmatprep.mubr.f32.mxu0 0.0
    %655 = vmatmul.mubr.f32.gmra.mrb[0].mxu0 %v450
    %v656 = vpop.f32.mrb[0].mxu0
    %v657 = vadd.f32 %v513, %v656
    %v658 = vpop.f32.mrb[0].mxu0
    %659 = vmatprep.mubr.f32.mxu0 0.0
    %660 = vmatmul.mubr.f32.gmra.mrb[0].mxu0 %v451
    %v661 = vpop.f32.mrb[0].mxu0
    %v662 = vadd.f32 %v518, %v661
    %v663 = vpop.f32.mrb[0].mxu0
    %664 = vmatprep.mubr.f32.mxu0 0.0
    %665 = vmatmul.mubr.f32.gmra.mrb[0].mxu0 %v452
    %v666 = vpop.f32.mrb[0].mxu0
    %v667 = vadd.f32 %v523, %v666
    %v668 = vpop.f32.mrb[0].mxu0
    %669 = vmatprep.mubr.f32.mxu0 0.0
    %670 = vmatmul.mubr.f32.gmra.mrb[0].mxu0 %v453
    %v671 = vpop.f32.mrb[0].mxu0
    %v672 = vadd.f32 %v528, %v671
    %v673 = vpop.f32.mrb[0].mxu0
    %674 = vmatprep.mubr.f32.mxu0 0.0
    %675 = vmatmul.mubr.f32.gmra.mrb[0].mxu0 %v454
    %v676 = vpop.f32.mrb[0].mxu0
    %v677 = vadd.f32 %v533, %v676
    %v678 = vpop.f32.mrb[0].mxu0
    %679 = vmatprep.mubr.f32.mxu0 0.0
    %680 = vmatmul.mubr.f32.gmra.mrb[0].mxu0 %v455
    %v681 = vpop.f32.mrb[0].mxu0
    %v682 = vadd.f32 %v538, %v681
    %v683 = vpop.f32.mrb[0].mxu0
    %684 = vmatprep.mubr.f32.mxu0 0.0
    %685 = vmatmul.mubr.f32.gmra.mrb[0].mxu0 %v456
    %v686 = vpop.f32.mrb[0].mxu0
    %v687 = vadd.f32 %v543, %v686
    %v688 = vpop.f32.mrb[0].mxu0
    %689 = vmatprep.mubr.f32.mxu0 0.0
    %690 = vmatmul.mubr.f32.gmra.mrb[0].mxu0 %v457
    %v691 = vpop.f32.mrb[0].mxu0
    %v692 = vadd.f32 %v548, %v691
    %v693 = vpop.f32.mrb[0].mxu0
    %694 = vmatprep.mubr.f32.mxu0 0.0
    %695 = vmatmul.mubr.f32.gmra.mrb[0].mxu0 %v458
    %v696 = vpop.f32.mrb[0].mxu0
    %v697 = vadd.f32 %v553, %v696
    %v698 = vpop.f32.mrb[0].mxu0
    %699 = vdwg.mxu0
    %v700 = vmul.f32 %v622, %v622
    %v701 = vmul.f32 %v627, %v627
    %v702 = vmul.f32 %v632, %v632
    %v703 = vmul.f32 %v637, %v637
    %v704 = vmul.f32 %v642, %v642
    %v705 = vmul.f32 %v647, %v647
    %v706 = vmul.f32 %v652, %v652
    %v707 = vmul.f32 %v657, %v657
    %v708 = vmul.f32 %v662, %v662
    %v709 = vmul.f32 %v667, %v667
    %v710 = vmul.f32 %v672, %v672
    %v711 = vmul.f32 %v677, %v677
    %v712 = vmul.f32 %v682, %v682
    %v713 = vmul.f32 %v687, %v687
    %v714 = vmul.f32 %v692, %v692
    %v715 = vmul.f32 %v697, %v697
    %v716 = vadd.f32 %v700, %v701
    %v717 = vadd.f32 %v716, %v702
    %v718 = vadd.f32 %v717, %v703
    %v719 = vadd.f32 %v718, %v704
    %v720 = vadd.f32 %v719, %v705
    %v721 = vadd.f32 %v720, %v706
    %v722 = vadd.f32 %v721, %v707
    %v723 = vadd.f32 %v722, %v708
    %v724 = vadd.f32 %v723, %v709
    %v725 = vadd.f32 %v724, %v710
    %v726 = vadd.f32 %v725, %v711
    %v727 = vadd.f32 %v726, %v712
    %v728 = vadd.f32 %v727, %v713
    %v729 = vadd.f32 %v728, %v714
    %v730 = vadd.f32 %v729, %v715
    %v731 = vrot.slane %v730, 4
    %v732 = vadd.f32 %v730, %v731
    %v733 = vrot.slane %v732, 2
    %v734 = vadd.f32 %v732, %v733
    %v735 = vrot.slane %v734, 1
    %v736 = vadd.f32 %v734, %v735
    %v737 = vmul.f32 %v736, %v375
    %v738 = vadd.f32 %v737, 1e-05
    %v739 = vrsqrt.pop %v738
    %v740 = vmul.f32 %v622, %v739
    %v741 = vmul.f32 %v627, %v739
    %v742 = vmul.f32 %v632, %v739
    %v743 = vmul.f32 %v637, %v739
    %v744 = vmul.f32 %v642, %v739
    %v745 = vmul.f32 %v647, %v739
    %v746 = vmul.f32 %v652, %v739
    %v747 = vmul.f32 %v657, %v739
    %v748 = vmul.f32 %v662, %v739
    %v749 = vmul.f32 %v667, %v739
    %v750 = vmul.f32 %v672, %v739
    %v751 = vmul.f32 %v677, %v739
    %v752 = vmul.f32 %v682, %v739
    %v753 = vmul.f32 %v687, %v739
    %v754 = vmul.f32 %v692, %v739
    %v755 = vmul.f32 %v697, %v739
    %vm756 = vcmp.gt.f32.partialorder %v740, 0.0
    %vm757 = vcmp.gt.f32.partialorder %v741, 0.0
    %vm758 = vcmp.gt.f32.partialorder %v742, 0.0
    %vm759 = vcmp.gt.f32.partialorder %v743, 0.0
    %vm760 = vcmp.gt.f32.partialorder %v744, 0.0
    %vm761 = vcmp.gt.f32.partialorder %v745, 0.0
    %vm762 = vcmp.gt.f32.partialorder %v746, 0.0
    %vm763 = vcmp.gt.f32.partialorder %v747, 0.0
    %vm764 = vcmp.gt.f32.partialorder %v748, 0.0
    %vm765 = vcmp.gt.f32.partialorder %v749, 0.0
    %vm766 = vcmp.gt.f32.partialorder %v750, 0.0
    %vm767 = vcmp.gt.f32.partialorder %v751, 0.0
    %vm768 = vcmp.gt.f32.partialorder %v752, 0.0
    %vm769 = vcmp.gt.f32.partialorder %v753, 0.0
    %vm770 = vcmp.gt.f32.partialorder %v754, 0.0
    %vm771 = vcmp.gt.f32.partialorder %v755, 0.0
    %v772 = vmul.f32 %v740, 0.01
    %v773 = vmul.f32 %v741, 0.01
    %v774 = vmul.f32 %v742, 0.01
    %v775 = vmul.f32 %v743, 0.01
    %v776 = vmul.f32 %v744, 0.01
    %v777 = vmul.f32 %v745, 0.01
    %v778 = vmul.f32 %v746, 0.01
    %v779 = vmul.f32 %v747, 0.01
    %v780 = vmul.f32 %v748, 0.01
    %v781 = vmul.f32 %v749, 0.01
    %v782 = vmul.f32 %v750, 0.01
    %v783 = vmul.f32 %v751, 0.01
    %v784 = vmul.f32 %v752, 0.01
    %v785 = vmul.f32 %v753, 0.01
    %v786 = vmul.f32 %v754, 0.01
    %v787 = vmul.f32 %v755, 0.01
    %v788 = vsel %vm756, %v740, %v772
    %v789 = vsel %vm757, %v741, %v773
    %v790 = vsel %vm758, %v742, %v774
    %v791 = vsel %vm759, %v743, %v775
    %v792 = vsel %vm760, %v744, %v776
    %v793 = vsel %vm761, %v745, %v777
    %v794 = vsel %vm762, %v746, %v778
    %v795 = vsel %vm763, %v747, %v779
    %v796 = vsel %vm764, %v748, %v780
    %v797 = vsel %vm765, %v749, %v781
    %v798 = vsel %vm766, %v750, %v782
    %v799 = vsel %vm767, %v751, %v783
    %v800 = vsel %vm768, %v752, %v784
    %v801 = vsel %vm769, %v753, %v785
    %v802 = vsel %vm770, %v754, %v786
    %v803 = vsel %vm771, %v755, %v787
    %v804 = vld [vmem:[%s5] sm:$0x1]
    %s805 = sld [smem:[#allocation2]]
    %v806 = vstv %s805
    %807 = vmatprep.subr.mxu0 0.0
    %808 = vmatpush1.msra.mxu0 %v788
    %809 = vmatprep.subr.mxu0 0.0
    %810 = vmatpush1.msra.mxu0 %v789
    %811 = vmatprep.subr.mxu0 0.0
    %812 = vmatpush1.msra.mxu0 %v790
    %813 = vmatprep.subr.mxu0 0.0
    %814 = vmatpush1.msra.mxu0 %v791
    %815 = vmatprep.subr.mxu0 0.0
    %816 = vmatpush1.msra.mxu0 %v792
    %817 = vmatprep.subr.mxu0 0.0
    %818 = vmatpush1.msra.mxu0 %v793
    %819 = vmatprep.subr.mxu0 0.0
    %820 = vmatpush1.msra.mxu0 %v794
    %821 = vmatprep.subr.mxu0 0.0
    %822 = vmatpush1.msra.mxu0 %v795
    %823 = vmatprep.subr.mxu0 0.0
    %824 = vmatpush1.msra.mxu0 %v796
    %825 = vmatprep.subr.mxu0 0.0
    %826 = vmatpush1.msra.mxu0 %v797
    %827 = vmatprep.subr.mxu0 0.0
    %828 = vmatpush1.msra.mxu0 %v798
    %829 = vmatprep.subr.mxu0 0.0
    %830 = vmatpush1.msra.mxu0 %v799
    %831 = vmatprep.subr.mxu0 0.0
    %832 = vmatpush1.msra.mxu0 %v800
    %833 = vmatprep.subr.mxu0 0.0
    %834 = vmatpush1.msra.mxu0 %v801
    %835 = vmatprep.subr.mxu0 0.0
    %836 = vmatpush1.msra.mxu0 %v802
    %837 = vmatprep.subr.mxu0 0.0
    %838 = vmatpush1.msra.mxu0 %v803
    %839 = vmatprep.subr.mxu0 0.0
    %840 = vmatpush1.msra.mxu0 0.0
    %841 = vmatprep.subr.mxu0 0.0
    %842 = vmatpush1.msra.mxu0 0.0
    %843 = vmatprep.subr.mxu0 0.0
    %844 = vmatpush1.msra.mxu0 0.0
    %845 = vmatprep.subr.mxu0 0.0
    %846 = vmatpush1.msra.mxu0 0.0
    %847 = vmatprep.subr.mxu0 0.0
    %848 = vmatpush1.msra.mxu0 0.0
    %849 = vmatprep.subr.mxu0 0.0
    %850 = vmatpush1.msra.mxu0 0.0
    %851 = vmatprep.subr.mxu0 0.0
    %852 = vmatpush1.msra.mxu0 0.0
    %853 = vmatprep.subr.mxu0 0.0
    %854 = vmatpush1.msra.mxu0 0.0
    %855 = vmatprep.subr.mxu0 0.0
    %856 = vmatpush1.msra.mxu0 0.0
    %857 = vmatprep.subr.mxu0 0.0
    %858 = vmatpush1.msra.mxu0 0.0
    %859 = vmatprep.subr.mxu0 0.0
    %860 = vmatpush1.msra.mxu0 0.0
    %861 = vmatprep.subr.mxu0 0.0
    %862 = vmatpush1.msra.mxu0 0.0
    %863 = vmatprep.subr.mxu0 0.0
    %864 = vmatpush1.msra.mxu0 0.0
    %865 = vmatprep.subr.mxu0 0.0
    %866 = vmatpush1.msra.mxu0 0.0
    %867 = vmatprep.subr.mxu0 0.0
    %868 = vmatpush1.msra.mxu0 0.0
    %869 = vmatprep.subr.mxu0 0.0
    %870 = vmatpush1.msra.mxu0 0.0
    %871 = vmatprep.mubr.f32.mxu0 0.0
    %872 = vmatmul.mubr.f32.gmra.mrb[0].mxu0 %v804
    %v873 = vpop.f32.mrb[0].mxu0
    %v874 = vadd.f32 %v806, %v873
    %v875 = vpop.f32.mrb[0].mxu0
    %876 = vdwg.mxu0
    %vm877 = vcmp.gt.f32.partialorder %v874, 0.0
    %v878 = vmul.f32 %v874, 0.01
    %v879 = vsel %vm877, %v874, %v878
    %880 = vst [vmem:[#allocation3] sm:$0x1] %v879
    // Predicated region
    $region30: #{_lse_core.1} parent=1 // pred_check
      _
    $region31: #{_lse_core.1} parent=1 // pred_check_branch
      %882 = sbr.rel (0) target = $region33
    $region32: #{_lse_core.1} parent=1 // pred_region
      %s884 = ssub.s32 16, 16
      %885 = vsyncadd [#allocation4], %s884
      %s887 = sshll.u32 [#allocation3], 4
      %s888 = int_to_ptr.vmem [resolvable:$true] %s887
      %890 = dma.vmem_to_hbm [thread:$0]  %s888, 16, %s7, [#allocation4]
    $region33: #{_lse_core.1} parent=1 // pred_fallthru
      _
    // Predicated region
    $region34: #{_lse_core.1} parent=1 // pred_check
      _
    $region35: #{_lse_core.1} parent=1 // pred_check_branch
      %892 = sbr.rel (0) target = $region37
    $region36: #{_lse_core.1} parent=1 // pred_region
      %893 = dma.done [#allocation4], 16
    $region37: #{_lse_core.1} parent=1 // pred_fallthru
      _
    %894 = vsyncpa [#allocation4], 1

</llo_original>
